<compile_context>
chip_gen: v6e
topology: v6e:2x2x1
jax: 0.10.0
libtpu: 0.0.40
codegen_flags: <defaults>
</compile_context>

<pallas_src>
from dataclasses import dataclass

import jax
import jax.numpy as jnp
from jax.experimental import pallas as pl
from jax.experimental.pallas import tpu as pltpu

_LANE = 128
_SUBLANE = 8

_TM_MAX = 512      # rows of x per tile
_TN_MAX = 1024     # output features per tile
_TK_MAX = 2048     # contraction per tile (kt == 1 whenever K_aligned <= this)
_PAD_TOL = 1.0 / 16.0


def _round_up(x, m):
    return ((x + m - 1) // m) * m


def _tile_and_pad(aligned, max_tile, unit, tol=_PAD_TOL):
    """Pick (padded_dim, tile).

    tile is a multiple of `unit`, <= max_tile; the padding padded_dim - aligned
    is either <= tol * padded_dim (largest such tile wins) or minimal.
    `aligned` must already be a multiple of `unit`, so tile=unit always gives
    zero padding as a guaranteed fallback.
    """
    if aligned <= max_tile:
        return aligned, aligned
    best = None  # (pad, -tile, padded, tile)
    t = (max_tile // unit) * unit
    while t >= unit:
        padded = _round_up(aligned, t)
        pad = padded - aligned
        if pad <= padded * tol:
            return padded, t          # largest acceptable tile (descending scan)
        if best is None or (pad, -t) < (best[0], best[1]):
            best = (pad, -t, padded, t)
        t -= unit
    return best[2], best[3]


def _vmem_limit_cap():
    """Scoped-VMEM cap with headroom below physical VMEM.

    v7x: 64 MiB physical -> ~48 MiB; v5e/v6e: 128 MiB -> ~96 MiB.
    Falls back to a v7x-safe 48 MiB if the query is unavailable.
    """
    try:
        cap = int(pltpu.get_tpu_info().vmem_capacity_bytes)
        return max((cap * 3) // 4, 32 << 20)
    except Exception:
        return 48 << 20


# --------------------------------------------------------------------------- #
# Kernels
# --------------------------------------------------------------------------- #
def _linear_bias_kernel_nosplit(x_ref, w_ref, b_ref, o_ref):
    """grid = 2D (no K split) -> full K per step, no accumulator needed."""
    acc = jnp.dot(x_ref[...], w_ref[...], preferred_element_type=jnp.float32)
    o_ref[...] = (acc + b_ref[...]).astype(o_ref.dtype)


def _linear_bias_kernel_ksplit(x_ref, w_ref, b_ref, o_ref, acc_ref):
    """grid = (M tiles, N tiles, K tiles); f32 accumulator seeded with the bias."""
    k = pl.program_id(2)

    @pl.when(k == 0)
    def _():
        # Seeding with the broadcast bias removes the epilogue add.
        acc_ref[...] = jnp.broadcast_to(b_ref[...], acc_ref.shape)

    acc_ref[...] += jnp.dot(
        x_ref[...], w_ref[...], preferred_element_type=jnp.float32
    )

    @pl.when(k == pl.num_programs(2) - 1)
    def _():
        o_ref[...] = acc_ref[...].astype(o_ref.dtype)


# --------------------------------------------------------------------------- #
# One-time weight preparation (host side, per layer)
# --------------------------------------------------------------------------- #
@dataclass(frozen=True)
class PreparedLinear:
    weight: jax.Array        # [k_pad, n_pad], compute dtype (bf16)
    bias: jax.Array          # [1, n_pad], float32
    in_features: int
    out_features: int
    k_pad: int
    n_pad: int
    tk: int
    tn: int
    compute_dtype: object


def prepare_linear_params(weight, bias=None, compute_dtype=jnp.bfloat16):
    """Cast + pad the base-layer weights once (not per forward call).

    weight: [K, N] ( = torch nn.Linear.weight.T ), bias: [N] / [1, N] / None.
    """
    K, N = weight.shape
    k_aligned = _round_up(K, _LANE)
    n_aligned = _round_up(N, _LANE)
    k_pad, tk = _tile_and_pad(k_aligned, _TK_MAX, _LANE)
    n_pad, tn = _tile_and_pad(n_aligned, _TN_MAX, _LANE)

    w_p = jnp.asarray(weight).astype(compute_dtype)
    if (k_pad, n_pad) != (K, N):
        w_p = jnp.pad(w_p, ((0, k_pad - K), (0, n_pad - N)))

    if bias is None:
        b_p = jnp.zeros((1, n_pad), jnp.float32)
    else:
        b_p = jnp.asarray(bias, jnp.float32).reshape(1, -1)
        if b_p.shape[1] != n_pad:
            b_p = jnp.pad(b_p, ((0, 0), (0, n_pad - b_p.shape[1])))

    return PreparedLinear(
        weight=w_p, bias=b_p, in_features=K, out_features=N,
        k_pad=k_pad, n_pad=n_pad, tk=tk, tn=tn, compute_dtype=compute_dtype,
    )


# --------------------------------------------------------------------------- #
# Forward
# --------------------------------------------------------------------------- #
def linear_forward(x, prep: PreparedLinear):
    """y = x @ W + b with W / b from prepare_linear_params (pre-cast, pre-padded)."""
    orig_shape = x.shape
    if x.ndim > 2:
        x = x.reshape(-1, orig_shape[-1])
    M, K = x.shape
    assert K == prep.in_features, (K, prep.in_features)
    out_dtype = x.dtype

    k_pad, n_pad, tk, tn = prep.k_pad, prep.n_pad, prep.tk, prep.tn
    kt = k_pad // tk

    # ---- M tiling (bf16 packs two rows per sublane -> prefer 16-row units) ----
    m_unit = 16 if M >= 16 else _SUBLANE
    m_aligned = _round_up(M, m_unit)
    m_pad, tm = _tile_and_pad(m_aligned, _TM_MAX, m_unit)
    mt = m_pad // tm
    nt = n_pad // tn

    # ---- decode regime: tiny M, full K resident; purely weight-HBM bound ------
    decode = (kt == 1) and (m_pad <= 32)
    if decode and nt % 2 == 1 and tn % 256 == 0:
        # Even number of N tiles so v7x's two TensorCores split the weight
        # stream; on single-TC v5e/v6e the extra grid step is negligible.
        tn //= 2
        nt *= 2

    # ---- cast + pad activations (weights are already prepared) ----------------
    x_p = x.astype(prep.compute_dtype)
    if (m_pad, k_pad) != (M, K):
        x_p = jnp.pad(x_p, ((0, m_pad - M), (0, k_pad - K)))

    in_b = jnp.dtype(prep.compute_dtype).itemsize
    out_b = jnp.dtype(out_dtype).itemsize

    # ---- grid / specs -----------------------------------------------------------
    if kt == 1:
        # Choose the grid order that streams the larger operand from HBM once.
        w_restream = (mt - 1) * k_pad * n_pad   # m-outer: weight refetched per row tile
        x_restream = (nt - 1) * m_pad * k_pad   # n-outer: x refetched per col tile
        n_outer = (mt > 1) and (nt > 1) and (w_restream > x_restream)
        if n_outer:
            grid = (nt, mt)
            in_specs = [
                pl.BlockSpec((tm, tk), lambda j, i: (i, 0)),
                pl.BlockSpec((tk, tn), lambda j, i: (0, j)),   # resident across inner M loop
                pl.BlockSpec((1, tn), lambda j, i: (0, j)),
            ]
            out_spec = pl.BlockSpec((tm, tn), lambda j, i: (i, j))
            x_bytes = nt * m_pad * k_pad * in_b
            w_bytes = k_pad * n_pad * in_b
        else:
            grid = (mt, nt)
            in_specs = [
                pl.BlockSpec((tm, tk), lambda i, j: (i, 0)),   # resident across inner N loop
                pl.BlockSpec((tk, tn), lambda i, j: (0, j)),
                pl.BlockSpec((1, tn), lambda i, j: (0, j)),
            ]
            out_spec = pl.BlockSpec((tm, tn), lambda i, j: (i, j))
            x_bytes = m_pad * k_pad * in_b
            w_bytes = mt * k_pad * n_pad * in_b
        kernel = _linear_bias_kernel_nosplit
        dims = ("parallel", "parallel")
        scratch = ()
    else:
        grid = (mt, nt, kt)
        in_specs = [
            pl.BlockSpec((tm, tk), lambda i, j, k: (i, k)),
            pl.BlockSpec((tk, tn), lambda i, j, k: (k, j)),
            pl.BlockSpec((1, tn), lambda i, j, k: (0, j)),
        ]
        out_spec = pl.BlockSpec((tm, tn), lambda i, j, k: (i, j))
        kernel = _linear_bias_kernel_ksplit
        dims = ("parallel", "parallel", "arbitrary")
        scratch = (pltpu.VMEM((tm, tn), jnp.float32),)
        x_bytes = nt * m_pad * k_pad * in_b
        w_bytes = mt * k_pad * n_pad * in_b

    # ---- VMEM budget & cost hint ------------------------------------------------
    vmem_bytes = (
        2 * tm * tk * in_b              # x tiles (double buffered)
        + 2 * tk * tn * in_b            # weight tiles
        + 2 * _SUBLANE * tn * 4         # bias tile (f32, sublane padded)
        + 2 * tm * tn * out_b           # output tiles
        + (tm * tn * 4 if kt > 1 else 0)  # f32 accumulator scratch
    )
    vmem_limit = int(min(_vmem_limit_cap(), max(2 * vmem_bytes, 8 << 20)))

    cost = pl.CostEstimate(
        flops=2 * m_pad * n_pad * k_pad,
        bytes_accessed=int(x_bytes + w_bytes + n_pad * 4 + m_pad * n_pad * out_b),
        transcendentals=0,
    )

    grid_spec = pltpu.PrefetchScalarGridSpec(
        num_scalar_prefetch=0,
        grid=grid,
        in_specs=in_specs,
        out_specs=out_spec,
        scratch_shapes=scratch,
    )

    y_pad = pl.pallas_call(
        kernel,
        out_shape=jax.ShapeDtypeStruct((m_pad, n_pad), out_dtype),
        grid_spec=grid_spec,
        compiler_params=pltpu.CompilerParams(
            dimension_semantics=dims,
            vmem_limit_bytes=vmem_limit,
        ),
        cost_estimate=cost,
    )(x_p, prep.weight, prep.bias)

    y = y_pad[:M, :prep.out_features]
    if len(orig_shape) > 2:
        y = y.reshape(*orig_shape[:-1], prep.out_features)
    return y


def base_layer_with_lora_forward(x, weight, bias):
    """Convenience (testing) entry point: prepares weights per call.

    Production use should prepare once (BaseLayerWithLoRA / prepare_linear_params)
    so the weight cast+pad is not repeated every forward.
    """
    return linear_forward(x, prepare_linear_params(weight, bias))


class BaseLayerWithLoRA:
    """JAX/Pallas mirror of sglang's BaseLayerWithLoRA wrapper.

    forward() only runs the base (linear) layer -- set_lora defaults to False,
    so lora_rank / scaling are carried but contribute nothing, matching the
    PyTorch reference module.
    """

    def __init__(self, weight, bias, lora_rank, scaling, lora_backend=None):
        self.lora_rank = lora_rank
        self.scaling = scaling
        self.set_lora = False
        self.lora_backend = lora_backend
        # Pre-cast (bf16) + pre-pad the base-layer weights ONCE so every
        # forward() streams only the ideal weight bytes from HBM.
        self._prep = prepare_linear_params(weight, bias)

    def forward(self, x):
        # TODO(synk): if set_lora is ever enabled, fuse the LoRA delta
        # (x @ A @ B * scaling) here; the reference forward() never applies it.
        return linear_forward(x, self._prep)

    def set_lora_info(self, *args):
        pass


# --------------------------------------------------------------------------- #
# Self-test
# --------------------------------------------------------------------------- #
def _reference(x, w, b):
    # Mirrors the kernel's bf16-input / f32-accumulate numerics.
    x32 = x.astype(jnp.bfloat16).astype(jnp.float32)
    w32 = w.astype(jnp.bfloat16).astype(jnp.float32)
    return jnp.dot(x32, w32, precision=jax.lax.Precision.HIGHEST) + jnp.asarray(
        b, jnp.float32
    ).reshape(1, -1)


if __name__ == "__main__":
    key = jax.random.PRNGKey(0)
    (k_x, k_w, k_b,
     k_x2, k_w2, k_b2,
     k_x3, k_w3, k_b3,
     k_x4, k_w4, k_b4) = jax.random.split(key, 12)

    # 1) Primary example: small decode-style shapes through the class wrapper.
    tokens, in_features, out_features = 8, 32, 64
    lora_rank, scaling = 4, 0.5  # carried attributes; unused in forward()

    x = jax.random.normal(k_x, (tokens, in_features), dtype=jnp.float32)
    weight = jax.random.normal(k_w, (in_features, out_features), dtype=jnp.float32) * 0.05
    bias = jax.random.normal(k_b, (1, out_features), dtype=jnp.float32) * 0.01

    layer = BaseLayerWithLoRA(weight, bias, lora_rank, scaling, lora_backend=None)
    y = layer.forward(x)
    jax.block_until_ready(y)
    assert y.shape == (tokens, out_features)
    assert jnp.allclose(y, _reference(x, weight, bias), atol=5e-3, rtol=5e-3)

    # 2) K-split (accumulator) path: K_aligned = 2560 > 2048 -> tk=1280, kt=2
    #    (no wasted padding: tk divides K exactly).
    x2 = jax.random.normal(k_x2, (16, 2560), dtype=jnp.float32)
    w2 = jax.random.normal(k_w2, (2560, 256), dtype=jnp.float32) * 0.02
    b2 = jax.random.normal(k_b2, (1, 256), dtype=jnp.float32) * 0.01
    y2 = base_layer_with_lora_forward(x2, w2, b2)
    jax.block_until_ready(y2)
    assert jnp.allclose(y2, _reference(x2, w2, b2), atol=5e-3, rtol=5e-3)

    # 3) Decode-style path (tiny M, full K resident, wide weight tiles, even nt).
    x3 = jax.random.normal(k_x3, (8, 256), dtype=jnp.float32)
    w3 = jax.random.normal(k_w3, (256, 2048), dtype=jnp.float32) * 0.02
    b3 = jax.random.normal(k_b3, (1, 2048), dtype=jnp.float32) * 0.01
    y3 = base_layer_with_lora_forward(x3, w3, b3)
    jax.block_until_ready(y3)
    assert jnp.allclose(y3, _reference(x3, w3, b3), atol=5e-3, rtol=5e-3)

    # 4) Tall-M / small-K prefill: exercises the swapped (weight-resident)
    #    grid order for the kt==1 path.
    x4 = jax.random.normal(k_x4, (1024, 256), dtype=jnp.float32)
    w4 = jax.random.normal(k_w4, (256, 2048), dtype=jnp.float32) * 0.02
    b4 = jax.random.normal(k_b4, (1, 2048), dtype=jnp.float32) * 0.01
    y4 = base_layer_with_lora_forward(x4, w4, b4)
    jax.block_until_ready(y4)
    assert jnp.allclose(y4, _reference(x4, w4, b4), atol=5e-3, rtol=5e-3)

    print("KERNEL_OK")
</pallas_src>

<mosaic_0001>
module attributes {stable_mosaic.version = 11 : i64} {
  func.func @_linear_bias_kernel_nosplit(%arg0: i32, %arg1: i32, %arg2: memref<8x128xbf16, #tpu.memory_space<vmem>>, %arg3: memref<128x128xbf16, #tpu.memory_space<vmem>>, %arg4: memref<1x128xf32, #tpu.memory_space<vmem>>, %arg5: memref<8x128xf32, #tpu.memory_space<vmem>>) attributes {dimension_semantics = [#tpu.dimension_semantics<parallel>, #tpu.dimension_semantics<parallel>], iteration_bounds = array<i64: 1, 1>, scalar_prefetch = 0 : i64, scratch_operands = 0 : i64, tpu.core_type = #tpu.core_type<tc>, window_params = [{transform_indices = @transform_0, window_bounds = array<i64: 8, 128>}, {transform_indices = @transform_1, window_bounds = array<i64: 128, 128>}, {transform_indices = @transform_2, window_bounds = array<i64: 1, 128>}, {transform_indices = @transform_3, window_bounds = array<i64: 8, 128>}]} {
    %c0 = arith.constant 0 : index
    %c0_0 = arith.constant 0 : index
    %0 = vector.load %arg2[%c0, %c0_0] : memref<8x128xbf16, #tpu.memory_space<vmem>>, vector<8x128xbf16>
    %c0_1 = arith.constant 0 : index
    %c0_2 = arith.constant 0 : index
    %1 = vector.load %arg3[%c0_1, %c0_2] : memref<128x128xbf16, #tpu.memory_space<vmem>>, vector<128x128xbf16>
    %cst = arith.constant dense<0.000000e+00> : vector<8x128xf32>
    %2 = tpu.matmul %0, %1, %cst {dimension_numbers = #tpu.dot_dimension_numbers<[1], [0], [0], [1], [0, 0, 1, 1], [], []>} : vector<8x128xbf16>, vector<128x128xbf16>, vector<8x128xf32> -> vector<8x128xf32>
    %c0_3 = arith.constant 0 : index
    %c0_4 = arith.constant 0 : index
    %3 = vector.load %arg4[%c0_3, %c0_4] : memref<1x128xf32, #tpu.memory_space<vmem>>, vector<1x128xf32>
    %4 = vector.broadcast %3 : vector<1x128xf32> to vector<8x128xf32>
    %5 = arith.addf %2, %4 : vector<8x128xf32>
    %c0_5 = arith.constant 0 : index
    %c0_6 = arith.constant 0 : index
    %6 = vector.load %arg5[%c0_5, %c0_6] : memref<8x128xf32, #tpu.memory_space<vmem>>, vector<8x128xf32>
    tpu.vector_store %arg5[%c0_5, %c0_6], %5 {strides = array<i32>} : memref<8x128xf32, #tpu.memory_space<vmem>>, vector<8x128xf32>,
    return
  }
  func.func @transform_0(%arg0: i32, %arg1: i32) -> (i32, i32) {
    %c0_i32 = arith.constant 0 : i32
    %c0_i32_0 = arith.constant 0 : i32
    return %arg0, %c0_i32 : i32, i32
  }
  func.func @transform_1(%arg0: i32, %arg1: i32) -> (i32, i32) {
    %c0_i32 = arith.constant 0 : i32
    %c0_i32_0 = arith.constant 0 : i32
    return %c0_i32, %arg1 : i32, i32
  }
  func.func @transform_2(%arg0: i32, %arg1: i32) -> (i32, i32) {
    %c0_i32 = arith.constant 0 : i32
    %c0_i32_0 = arith.constant 0 : i32
    return %c0_i32, %arg1 : i32, i32
  }
  func.func @transform_3(%arg0: i32, %arg1: i32) -> (i32, i32) {
    %c0_i32 = arith.constant 0 : i32
    return %arg0, %arg1 : i32, i32
  }
}

</mosaic_0001>

<llo_original>
// kernel: tpu_custom_call.1
$region0: #{tpu_custom_call.1}
  #allocation0 [shape = 'u32[]', space=smem, size = 0x4, offset = 0x4, fixed_abs, tag = 'smem constant byte address 0x4 - core index']
  #allocation1 [shape = 'u32[144,128]{1,0:T(1,128)}', space=vmem, size = 0x12000, scoped, tag = 'internal scratch']
  %s0 = inlined_call_operand.hbm [shape: bf16[8,128], index: 0, kind: input, shape index: {}]
  %s1 = inlined_call_operand.hbm [shape: bf16[128,128], index: 1, kind: input, shape index: {}]
  %s2 = inlined_call_operand.vmem [shape: f32[1,128], index: 2, kind: input, shape index: {}]
  %s3 = inlined_call_operand.hbm [shape: f32[8,128], index: 3, kind: output, shape index: {}]
  %s4 = sld [smem:[#allocation0]]
  $region30: #{tpu_custom_call.1} parent=0
    _
  %s6 = ssub.s32 1, %s4
  %s7 = scalar_select 0, %s6, %s4
  $region1: #{tpu_custom_call.1} parent=0
    #allocation2 [shape = 'u8[2048]{0}', space=vmem, size = 0x800, scoped, tag = 'input window, operand 0, single buffered']
    #allocation3 [shape = 's32[1]{0}', space=sflag, size = 0x4, scoped, tag = 'scoped memory for tpu_custom_call.1']
    #allocation4 [shape = 's32[1]{0}', space=sflag, size = 0x4, scoped, tag = 'scoped memory for tpu_custom_call.1']
    #allocation5 [shape = 'u8[32768]{0}', space=vmem, size = 0x8000, scoped, tag = 'input window, operand 1, single buffered']
    #allocation6 [shape = 's32[1]{0}', space=sflag, size = 0x4, scoped, tag = 'scoped memory for tpu_custom_call.1']
    #allocation7 [shape = 'u8[4096]{0}', space=vmem, size = 0x1000, scoped, tag = 'output window, operand 0, single buffered']
    %8 = vsyncpa [#allocation3], 0
    %9 = vsyncpa [#allocation6], 0
    %10 = vsyncpa [#allocation4], 0
    // Predicated region
    $region2: #{tpu_custom_call.1} parent=1 // pred_check
      _
    $region3: #{tpu_custom_call.1} parent=1 // pred_check_branch
      %12 = sbr.rel (0) target = $region5
    $region4: #{tpu_custom_call.1} parent=1 // pred_region
      %s14 = ssub.s32 64, 64
      %15 = vsyncadd [#allocation3], %s14
      %s17 = sshll.u32 [#allocation2], 4
      %s18 = int_to_ptr.vmem [resolvable:$true] %s17
      %20 = dma.hbm_to_vmem [thread:$0]  %s0, 64, %s18, [#allocation3]
    $region5: #{tpu_custom_call.1} parent=1 // pred_fallthru
      _
    // Predicated region
    $region6: #{tpu_custom_call.1} parent=1 // pred_check
      _
    $region7: #{tpu_custom_call.1} parent=1 // pred_check_branch
      %22 = sbr.rel (0) target = $region9
    $region8: #{tpu_custom_call.1} parent=1 // pred_region
      %s24 = ssub.s32 1024, 1024
      %25 = vsyncadd [#allocation6], %s24
      %s26 = sshll.u32 [#allocation5], 4
      %s27 = int_to_ptr.vmem [resolvable:$true] %s26
      %32 = dma.hbm_to_vmem [thread:$0]  %s1, 1024, %s27, [#allocation6], 64, 64, 4
    $region9: #{tpu_custom_call.1} parent=1 // pred_fallthru
      _
    // Predicated region
    $region10: #{tpu_custom_call.1} parent=1 // pred_check
      _
    $region11: #{tpu_custom_call.1} parent=1 // pred_check_branch
      %34 = sbr.rel (0) target = $region13
    $region12: #{tpu_custom_call.1} parent=1 // pred_region
      _
    $region13: #{tpu_custom_call.1} parent=1 // pred_fallthru
      _
    // Predicated region
    $region14: #{tpu_custom_call.1} parent=1 // pred_check
      _
    $region15: #{tpu_custom_call.1} parent=1 // pred_check_branch
      %36 = sbr.rel (0) target = $region17
    $region16: #{tpu_custom_call.1} parent=1 // pred_region
      %37 = dma.done [#allocation3], 64
    $region17: #{tpu_custom_call.1} parent=1 // pred_fallthru
      _
    // Predicated region
    $region18: #{tpu_custom_call.1} parent=1 // pred_check
      _
    $region19: #{tpu_custom_call.1} parent=1 // pred_check_branch
      %39 = sbr.rel (0) target = $region21
    $region20: #{tpu_custom_call.1} parent=1 // pred_region
      %40 = dma.done [#allocation6], 1024
    $region21: #{tpu_custom_call.1} parent=1 // pred_fallthru
      _
    %v42 = vld [vmem:[#allocation2] sm:$0xf]
    %v43 = vld [vmem:[#allocation5] sm:$0xf]
    %v44 = vld [vmem:[#allocation5 + $0x4] sm:$0xf]
    %v45 = vld [vmem:[#allocation5 + $0x8] sm:$0xf]
    %v46 = vld [vmem:[#allocation5 + $0xc] sm:$0xf]
    %v47 = vld [vmem:[#allocation5 + $0x10] sm:$0xf]
    %v48 = vld [vmem:[#allocation5 + $0x14] sm:$0xf]
    %v49 = vld [vmem:[#allocation5 + $0x18] sm:$0xf]
    %v50 = vld [vmem:[#allocation5 + $0x1c] sm:$0xf]
    %v51 = vld [vmem:[#allocation5 + $0x20] sm:$0xf]
    %v52 = vld [vmem:[#allocation5 + $0x24] sm:$0xf]
    %v53 = vld [vmem:[#allocation5 + $0x28] sm:$0xf]
    %v54 = vld [vmem:[#allocation5 + $0x2c] sm:$0xf]
    %v55 = vld [vmem:[#allocation5 + $0x30] sm:$0xf]
    %v56 = vld [vmem:[#allocation5 + $0x34] sm:$0xf]
    %v57 = vld [vmem:[#allocation5 + $0x38] sm:$0xf]
    %v58 = vld [vmem:[#allocation5 + $0x3c] sm:$0xf]
    %v59 = vld [vmem:[%s2] sm:$0x1]
    %v61 = vlaneseq
    %v62 = vshrl.u32 %v61, 7
    %v63 = vsub.s32 0, %v62
    %v64 = vrot.slane %v59, %v63
    %v82 = vunpack.c.l.b16 %v43
    %v83 = vunpack.c.l.b16 %v44
    %v84 = vunpack.c.l.b16 %v45
    %v85 = vunpack.c.l.b16 %v46
    %v86 = vunpack.c.l.b16 %v47
    %v87 = vunpack.c.l.b16 %v48
    %v88 = vunpack.c.l.b16 %v49
    %v89 = vunpack.c.l.b16 %v50
    %v90 = vunpack.c.l.b16 %v51
    %v91 = vunpack.c.l.b16 %v52
    %v92 = vunpack.c.l.b16 %v53
    %v93 = vunpack.c.l.b16 %v54
    %v94 = vunpack.c.l.b16 %v55
    %v95 = vunpack.c.l.b16 %v56
    %v96 = vunpack.c.l.b16 %v57
    %v97 = vunpack.c.l.b16 %v58
    %v98 = vpack.c.b16 %v83, %v82
    %v99 = vpack.c.b16 %v85, %v84
    %v100 = vpack.c.b16 %v87, %v86
    %v101 = vpack.c.b16 %v89, %v88
    %v102 = vpack.c.b16 %v91, %v90
    %v103 = vpack.c.b16 %v93, %v92
    %v104 = vpack.c.b16 %v95, %v94
    %v105 = vpack.c.b16 %v97, %v96
    %114 = vmatprep.subr.bf16.mxu0 0
    %115 = vmatpush1.bf16.msra.mxu0 %v105
    %116 = vmatprep.subr.bf16.mxu0 0
    %117 = vmatpush1.bf16.msra.mxu0 %v104
    %118 = vmatprep.subr.bf16.mxu0 0
    %119 = vmatpush1.bf16.msra.mxu0 %v103
    %120 = vmatprep.subr.bf16.mxu0 0
    %121 = vmatpush1.bf16.msra.mxu0 %v102
    %122 = vmatprep.subr.bf16.mxu0 0
    %123 = vmatpush1.bf16.msra.mxu0 %v101
    %124 = vmatprep.subr.bf16.mxu0 0
    %125 = vmatpush1.bf16.msra.mxu0 %v100
    %126 = vmatprep.subr.bf16.mxu0 0
    %127 = vmatpush1.bf16.msra.mxu0 %v99
    %128 = vmatprep.subr.bf16.mxu0 0
    %129 = vmatpush1.bf16.msra.mxu0 %v98
    %130 = vmatprep.subr.bf16.mxu0 0
    %131 = vmatpush2.bf16.msra.mxu0 0
    %132 = vmatprep.subr.bf16.mxu0 0
    %133 = vmatpush2.bf16.msra.mxu0 0
    %134 = vmatprep.subr.bf16.mxu0 0
    %135 = vmatpush2.bf16.msra.mxu0 0
    %136 = vmatprep.subr.bf16.mxu0 0
    %137 = vmatpush2.bf16.msra.mxu0 0
    %138 = vmatprep.subr.bf16.mxu0 0
    %139 = vmatpush2.bf16.msra.mxu0 0
    %140 = vmatprep.subr.bf16.mxu0 0
    %141 = vmatpush2.bf16.msra.mxu0 0
    %142 = vmatprep.subr.bf16.mxu0 0
    %143 = vmatpush2.bf16.msra.mxu0 0
    %144 = vmatprep.subr.bf16.mxu0 0
    %145 = vmatpush2.bf16.msra.mxu0 0
    %146 = vmatprep.mubr.bf16.mxu0 0
    %147 = vmatmul.mubr.bf16.gmra.mxu0 %v42
    %v148 = vpop.f32.mrf.mxu0
    %v149 = vadd.f32 %v64, %v148
    %v150 = vpop.f32.mrf.mxu0
    %v151 = vpop.f32.mrf.mxu0
    %v152 = vpop.f32.mrf.mxu0
    %153 = vdwg.mxu0
    %154 = vst [vmem:[#allocation7] sm:$0xff] %v149
    // Predicated region
    $region22: #{tpu_custom_call.1} parent=1 // pred_check
      _
    $region23: #{tpu_custom_call.1} parent=1 // pred_check_branch
      %156 = sbr.rel (0) target = $region25
    $region24: #{tpu_custom_call.1} parent=1 // pred_region
      %s158 = ssub.s32 128, 128
      %159 = vsyncadd [#allocation4], %s158
      %s161 = sshll.u32 [#allocation7], 4
      %s162 = int_to_ptr.vmem [resolvable:$true] %s161
      %164 = dma.vmem_to_hbm [thread:$0]  %s162, 128, %s3, [#allocation4]
    $region25: #{tpu_custom_call.1} parent=1 // pred_fallthru
      _
    // Predicated region
    $region26: #{tpu_custom_call.1} parent=1 // pred_check
      _
    $region27: #{tpu_custom_call.1} parent=1 // pred_check_branch
      %166 = sbr.rel (0) target = $region29
    $region28: #{tpu_custom_call.1} parent=1 // pred_region
      %167 = dma.done [#allocation4], 128
    $region29: #{tpu_custom_call.1} parent=1 // pred_fallthru
      _
    %168 = vsyncpa [#allocation3], 1
    %169 = vsyncpa [#allocation6], 1
    %170 = vsyncpa [#allocation4], 1

</llo_original>
